<compile_context>
chip_gen: v6e
topology: v6e:2x2x1
jax: 0.10.0
libtpu: 0.0.40
codegen_flags: <defaults>
</compile_context>

<pallas_src>
import functools

import jax
import jax.numpy as jnp
from jax.experimental import pallas as pl
from jax.experimental.pallas import tpu as pltpu

LEAKY_SLOPE = 0.01   # nn.LeakyReLU() default negative_slope
LANE = 128           # TPU lane width
SUBLANE = 8          # f32 sublane width


def _round_up(n, m):
    return ((n + m - 1) // m) * m


def _vmem_capacity_bytes():
    """Physical VMEM per core; conservative 64 MiB fallback if query fails."""
    try:
        return int(pltpu.get_tpu_info().vmem_capacity_bytes)
    except Exception:
        return 64 << 20


def _default_activation_dtype(compute_dtype):
    """bf16 activations on bf16-native VPUs (v6e/v7x); f32 on v5e / f32 mode."""
    if jnp.dtype(compute_dtype) == jnp.dtype(jnp.float32):
        return jnp.float32
    try:
        kind = jax.devices()[0].device_kind.lower()
    except Exception:
        kind = ""
    if "v5 lite" in kind or "v5e" in kind or "v5litepod" in kind:
        return jnp.float32          # v5e VALU has no native bf16
    return compute_dtype


# ----------------------------------------------------------------------------
# Parameter preparation (pad + cast ONCE, not per forward call)
# ----------------------------------------------------------------------------
def prepare_params(weights, biases, compute_dtype=jnp.bfloat16):
    """Pad feature dims to lane multiples and cast weights to compute_dtype.

    weights[i]: (d_in_i, d_out_i) float32 (PyTorch W.T layout)
    biases[i]:  (d_out_i,) float32

    Layer 0's input dim is left UNPADDED (so x is never lane-padded in HBM);
    all hidden/output dims are padded to multiples of 128.
    """
    assert len(weights) == len(biases)
    dims = [weights[0].shape[0]] + [w.shape[1] for w in weights]
    k_dims = [dims[0]] + [_round_up(d, LANE) for d in dims[1:-1]]   # layer input dims
    n_dims = [_round_up(d, LANE) for d in dims[1:]]                 # layer output dims

    pw, pb = [], []
    for i, (w, b) in enumerate(zip(weights, biases)):
        wi = jnp.pad(w, ((0, k_dims[i] - w.shape[0]), (0, n_dims[i] - w.shape[1])))
        pw.append(wi.astype(compute_dtype))
        bi = jnp.pad(b.reshape(1, -1), ((0, 0), (0, n_dims[i] - b.shape[0])))
        pb.append(bi.astype(jnp.float32))       # bias add stays in f32

    return dict(weights=tuple(pw), biases=tuple(pb), dims=tuple(dims),
                k_dims=tuple(k_dims), n_dims=tuple(n_dims),
                compute_dtype=jnp.dtype(compute_dtype))


# ----------------------------------------------------------------------------
# Fused path: whole MLP in one kernel, weights VMEM-resident
# ----------------------------------------------------------------------------
def _mlp_kernel(*refs, n_layers, compute_dtype, activation_dtype):
    # refs = (x_ref, w0, b0, w1, b1, ..., w_{L-1}, b_{L-1}, out_ref)
    x_ref = refs[0]
    out_ref = refs[-1]
    params = refs[1:-1]

    h = x_ref[...]                                       # already compute_dtype
    for i in range(n_layers):
        w = params[2 * i][...]                           # compute_dtype
        b = params[2 * i + 1][...]                       # f32 (1, n_pad)
        acc = jnp.dot(h.astype(compute_dtype), w,
                      preferred_element_type=jnp.float32)   # f32 MXU accumulate
        h = acc + b                                      # f32 bias add
        if i < n_layers - 1:
            # LeakyReLU; keep activations in activation_dtype (bf16 on v6e/v7x)
            h = jnp.where(h > 0, h, LEAKY_SLOPE * h).astype(activation_dtype)
    out_ref[...] = h.astype(out_ref.dtype)


def _fused_forward(x, params, *, tm, b_pad, activation_dtype, vmem_limit):
    weights, biases = params["weights"], params["biases"]
    compute_dtype = params["compute_dtype"]
    n_dims = params["n_dims"]
    n_layers = len(weights)
    B, d_in = x.shape

    grid = (b_pad // tm,)
    # NOTE(v7x): with grid == (1,) only one TensorCore gets work; at realistic
    # batch sizes b_pad // tm >= 2 and the "parallel" axis splits across TCs.

    # Only the batch dim of x is padded; feature dim stays unpadded in HBM and
    # x is pre-cast to compute_dtype (halves streamed activation bytes).
    x_p = jnp.pad(x, ((0, b_pad - B), (0, 0))).astype(compute_dtype)

    resident = pl.Buffered(1)    # never re-fetched -> single buffer, half VMEM
    in_specs = [pl.BlockSpec((tm, d_in), lambda i: (i, 0))]
    args = [x_p]
    for li in range(n_layers):
        in_specs.append(pl.BlockSpec(weights[li].shape, lambda i: (0, 0),
                                     pipeline_mode=resident))
        in_specs.append(pl.BlockSpec(biases[li].shape, lambda i: (0, 0),
                                     pipeline_mode=resident))
        args.append(weights[li])
        args.append(biases[li])
    out_specs = pl.BlockSpec((tm, n_dims[-1]), lambda i: (i, 0))
    out_shape = jax.ShapeDtypeStruct((b_pad, n_dims[-1]), x.dtype)

    # Cost hint for XLA scheduling around the custom call.
    k_dims = params["k_dims"]
    flops = 2 * b_pad * sum(k_dims[i] * n_dims[i] for i in range(n_layers))
    weight_bytes = sum(w.size * w.dtype.itemsize for w in weights)
    weight_bytes += sum(b.size * 4 for b in biases)
    bytes_accessed = (x_p.size * x_p.dtype.itemsize + weight_bytes
                      + b_pad * n_dims[-1] * 4)
    cost = pl.CostEstimate(flops=flops, transcendentals=0,
                           bytes_accessed=bytes_accessed)

    out = pl.pallas_call(
        functools.partial(_mlp_kernel, n_layers=n_layers,
                          compute_dtype=compute_dtype,
                          activation_dtype=activation_dtype),
        out_shape=out_shape,
        grid=grid,
        in_specs=in_specs,
        out_specs=out_specs,
        compiler_params=pltpu.CompilerParams(
            dimension_semantics=("parallel",),
            vmem_limit_bytes=int(vmem_limit)),
        cost_estimate=cost,
    )(*args)
    return out[:B, :params["dims"][-1]]


# ----------------------------------------------------------------------------
# Streamed fallback: per-layer (M, N, K)-tiled matmul with fused bias + act
# ----------------------------------------------------------------------------
def _linear_kernel(h_ref, w_ref, b_ref, o_ref, acc_ref, *, apply_act):
    @pl.when(pl.program_id(2) == 0)
    def _():
        acc_ref[...] = jnp.zeros_like(acc_ref)

    acc_ref[...] += jnp.dot(h_ref[...], w_ref[...],
                            preferred_element_type=jnp.float32)

    @pl.when(pl.program_id(2) == pl.num_programs(2) - 1)
    def _():
        r = acc_ref[...] + b_ref[...]
        if apply_act:
            r = jnp.where(r > 0, r, LEAKY_SLOPE * r)
        o_ref[...] = r.astype(o_ref.dtype)


def _linear_streamed(h, w, b, *, apply_act, out_dtype,
                     block_m=512, block_n=512, block_k=512):
    M, K = h.shape
    Kw, N = w.shape
    assert K == Kw
    tm = min(block_m, _round_up(M, SUBLANE))
    tk = min(block_k, _round_up(K, LANE))
    tn = min(block_n, _round_up(N, LANE))
    Mp, Kp, Np = _round_up(M, tm), _round_up(K, tk), _round_up(N, tn)

    hp = jnp.pad(h, ((0, Mp - M), (0, Kp - K)))
    wp = jnp.pad(w, ((0, Kp - K), (0, Np - N)))
    bp = jnp.pad(b, ((0, 0), (0, Np - N)))

    grid = (Mp // tm, Np // tn, Kp // tk)
    out = pl.pallas_call(
        functools.partial(_linear_kernel, apply_act=apply_act),
        out_shape=jax.ShapeDtypeStruct((Mp, Np), out_dtype),
        grid=grid,
        in_specs=[pl.BlockSpec((tm, tk), lambda i, j, k: (i, k)),
                  pl.BlockSpec((tk, tn), lambda i, j, k: (k, j)),
                  pl.BlockSpec((1, tn), lambda i, j, k: (0, j))],
        out_specs=pl.BlockSpec((tm, tn), lambda i, j, k: (i, j)),
        scratch_shapes=[pltpu.VMEM((tm, tn), jnp.float32)],
        compiler_params=pltpu.CompilerParams(
            dimension_semantics=("parallel", "parallel", "arbitrary")),
    )(hp, wp, bp)
    return out[:M, :N]


def _streamed_forward(x, params, *, activation_dtype):
    weights, biases = params["weights"], params["biases"]
    compute_dtype = params["compute_dtype"]
    n_layers = len(weights)
    h = x
    for i in range(n_layers):
        last = i == n_layers - 1
        out_dtype = x.dtype if last else activation_dtype
        h = _linear_streamed(h.astype(compute_dtype), weights[i], biases[i],
                             apply_act=not last, out_dtype=out_dtype)
    return h[:, :params["dims"][-1]]


# ----------------------------------------------------------------------------
# Public entry point
# ----------------------------------------------------------------------------
def feedforward_nn(x, params, *, block_m=None, activation_dtype=None,
                   force_streamed=False):
    """Forward pass of FeedForwardNN.

    x:      (B, D_in) float32
    params: output of prepare_params(weights, biases, compute_dtype)
    returns (B, D_out_last) float32
    """
    compute_dtype = params["compute_dtype"]
    dims, n_dims = params["dims"], params["n_dims"]
    B, d_in = x.shape
    assert d_in == dims[0], "x feature dim does not match prepared params"

    if activation_dtype is None:
        activation_dtype = _default_activation_dtype(compute_dtype)
    activation_dtype = jnp.dtype(activation_dtype)

    # ---- generation-aware VMEM economics --------------------------------
    vmem_cap = _vmem_capacity_bytes()
    budget = int(0.8 * vmem_cap)                  # ~51 MiB on v7x, ~102 MiB on v5e/v6e
    if block_m is None:
        block_m = 512 if vmem_cap <= (64 << 20) else 1024
    tm = min(block_m, _round_up(B, SUBLANE))
    b_pad = _round_up(B, tm)

    cdt_size = compute_dtype.itemsize
    act_size = activation_dtype.itemsize
    weight_bytes = sum(w.size * w.dtype.itemsize for w in params["weights"])
    weight_bytes += sum(b.size * 4 for b in params["biases"])
    # double-buffered streamed in/out tiles
    stream_bytes = 2 * tm * d_in * cdt_size + 2 * tm * n_dims[-1] * 4
    # live intermediates for the widest layer: f32 accumulator + compute-dtype
    # matmul operand + activation copy
    max_feat = max([d_in] + list(n_dims))
    live_bytes = tm * max_feat * (4 + cdt_size + act_size)
    need = weight_bytes + stream_bytes + live_bytes + (4 << 20)   # slack

    resident_ok = need <= budget

    if force_streamed or not resident_ok:
        return _streamed_forward(x, params, activation_dtype=activation_dtype)

    vmem_limit = min(budget, max(need, 32 << 20))
    return _fused_forward(x, params, tm=tm, b_pad=b_pad,
                          activation_dtype=activation_dtype,
                          vmem_limit=vmem_limit)


# ----------------------------------------------------------------------------
# Init / reference
# ----------------------------------------------------------------------------
def init_params(key, layer_dims):
    """Deterministic PyTorch-Linear-style init: U(-1/sqrt(fan_in), 1/sqrt(fan_in))."""
    weights, biases = [], []
    for d_in, d_out in zip(layer_dims[:-1], layer_dims[1:]):
        key, kw, kb = jax.random.split(key, 3)
        bound = 1.0 / jnp.sqrt(jnp.float32(d_in))
        # stored transposed relative to PyTorch: (in, out)
        weights.append(jax.random.uniform(kw, (d_in, d_out), jnp.float32,
                                          minval=-bound, maxval=bound))
        biases.append(jax.random.uniform(kb, (d_out,), jnp.float32,
                                         minval=-bound, maxval=bound))
    return weights, biases


def reference_forward(x, weights, biases):
    h = x
    n = len(weights)
    for i, (w, b) in enumerate(zip(weights, biases)):
        h = h @ w + b
        if i < n - 1:
            h = jnp.where(h > 0, h, LEAKY_SLOPE * h)
    return h


if __name__ == "__main__":
    # Module config analog:
    #   input  -> list of length 4   (input features = 4)
    #   hidden_sizes = [32, 32]
    #   output -> list of length 3   (output features = 3)
    batch = 8
    in_dim = 4
    hidden_sizes = [32, 32]
    out_dim = 3
    layer_dims = [in_dim] + hidden_sizes + [out_dim]

    key = jax.random.PRNGKey(0)
    key, kx = jax.random.split(key)
    x = jax.random.normal(kx, (batch, in_dim), jnp.float32)

    weights, biases = init_params(key, layer_dims)
    y_ref = reference_forward(x, weights, biases)

    # 1) exact path: f32 matmul operands + f32 activations, tight tolerance.
    p_f32 = prepare_params(weights, biases, compute_dtype=jnp.float32)
    y_f32 = jax.block_until_ready(feedforward_nn(x, p_f32))
    assert y_f32.shape == (batch, out_dim)
    assert jnp.allclose(y_f32, y_ref, atol=1e-5, rtol=1e-5), "f32 mismatch vs reference"

    # 2) fast fused path: bf16 streaming/operands, f32 MXU accumulation,
    #    resident weights with Buffered(1).
    p_bf16 = prepare_params(weights, biases, compute_dtype=jnp.bfloat16)
    y_bf16 = jax.block_until_ready(feedforward_nn(x, p_bf16))
    assert y_bf16.shape == (batch, out_dim)
    assert jnp.allclose(y_bf16, y_ref, atol=2e-2, rtol=2e-2), "bf16 mismatch vs reference"

    # 3) streamed fallback (used automatically when weights exceed the VMEM
    #    residency budget); forced here to verify it compiles and is correct.
    y_str = jax.block_until_ready(feedforward_nn(x, p_bf16, force_streamed=True))
    assert y_str.shape == (batch, out_dim)
    assert jnp.allclose(y_str, y_ref, atol=2e-2, rtol=2e-2), "streamed mismatch vs reference"

    print("KERNEL_OK")
</pallas_src>

<mosaic_0001>
module attributes {stable_mosaic.version = 11 : i64} {
  func.func @_mlp_kernel(%arg0: i32, %arg1: memref<8x4xf32, #tpu.memory_space<vmem>>, %arg2: memref<4x128xf32, #tpu.memory_space<vmem>>, %arg3: memref<1x128xf32, #tpu.memory_space<vmem>>, %arg4: memref<128x128xf32, #tpu.memory_space<vmem>>, %arg5: memref<1x128xf32, #tpu.memory_space<vmem>>, %arg6: memref<128x128xf32, #tpu.memory_space<vmem>>, %arg7: memref<1x128xf32, #tpu.memory_space<vmem>>, %arg8: memref<8x128xf32, #tpu.memory_space<vmem>>) attributes {dimension_semantics = [#tpu.dimension_semantics<parallel>], iteration_bounds = array<i64: 1>, scalar_prefetch = 0 : i64, scratch_operands = 0 : i64, tpu.core_type = #tpu.core_type<tc>, window_params = [{transform_indices = @transform_0, window_bounds = array<i64: 8, 4>}, {pipeline_mode = #tpu.pipeline_mode<synchronous>, transform_indices = @transform_1, window_bounds = array<i64: 4, 128>}, {pipeline_mode = #tpu.pipeline_mode<synchronous>, transform_indices = @transform_2, window_bounds = array<i64: 1, 128>}, {pipeline_mode = #tpu.pipeline_mode<synchronous>, transform_indices = @transform_3, window_bounds = array<i64: 128, 128>}, {pipeline_mode = #tpu.pipeline_mode<synchronous>, transform_indices = @transform_4, window_bounds = array<i64: 1, 128>}, {pipeline_mode = #tpu.pipeline_mode<synchronous>, transform_indices = @transform_5, window_bounds = array<i64: 128, 128>}, {pipeline_mode = #tpu.pipeline_mode<synchronous>, transform_indices = @transform_6, window_bounds = array<i64: 1, 128>}, {transform_indices = @transform_7, window_bounds = array<i64: 8, 128>}]} {
    %c0 = arith.constant 0 : index
    %c0_0 = arith.constant 0 : index
    %0 = vector.load %arg1[%c0, %c0_0] : memref<8x4xf32, #tpu.memory_space<vmem>>, vector<8x4xf32>
    %c0_1 = arith.constant 0 : index
    %c0_2 = arith.constant 0 : index
    %1 = vector.load %arg2[%c0_1, %c0_2] : memref<4x128xf32, #tpu.memory_space<vmem>>, vector<4x128xf32>
    %c0_3 = arith.constant 0 : index
    %c0_4 = arith.constant 0 : index
    %2 = vector.load %arg3[%c0_3, %c0_4] : memref<1x128xf32, #tpu.memory_space<vmem>>, vector<1x128xf32>
    %cst = arith.constant dense<0.000000e+00> : vector<8x128xf32>
    %3 = tpu.matmul %0, %1, %cst {dimension_numbers = #tpu.dot_dimension_numbers<[1], [0], [0], [1], [0, 0, 1, 1], [], []>} : vector<8x4xf32>, vector<4x128xf32>, vector<8x128xf32> -> vector<8x128xf32>
    %4 = vector.broadcast %2 : vector<1x128xf32> to vector<8x128xf32>
    %5 = arith.addf %3, %4 : vector<8x128xf32>
    %cst_5 = arith.constant 0.000000e+00 : f32
    %6 = vector.broadcast %cst_5 : f32 to vector<8x128xf32>
    %7 = arith.cmpf ogt, %5, %6 : vector<8x128xf32>
    %cst_6 = arith.constant 0.00999999977 : f32
    %8 = vector.broadcast %cst_6 : f32 to vector<8x128xf32>
    %9 = arith.mulf %8, %5 : vector<8x128xf32>
    %10 = arith.select %7, %5, %9 : vector<8x128xi1>, vector<8x128xf32>
    %c0_7 = arith.constant 0 : index
    %c0_8 = arith.constant 0 : index
    %11 = vector.load %arg4[%c0_7, %c0_8] : memref<128x128xf32, #tpu.memory_space<vmem>>, vector<128x128xf32>
    %c0_9 = arith.constant 0 : index
    %c0_10 = arith.constant 0 : index
    %12 = vector.load %arg5[%c0_9, %c0_10] : memref<1x128xf32, #tpu.memory_space<vmem>>, vector<1x128xf32>
    %cst_11 = arith.constant dense<0.000000e+00> : vector<8x128xf32>
    %13 = tpu.matmul %10, %11, %cst_11 {dimension_numbers = #tpu.dot_dimension_numbers<[1], [0], [0], [1], [0, 0, 1, 1], [], []>} : vector<8x128xf32>, vector<128x128xf32>, vector<8x128xf32> -> vector<8x128xf32>
    %14 = vector.broadcast %12 : vector<1x128xf32> to vector<8x128xf32>
    %15 = arith.addf %13, %14 : vector<8x128xf32>
    %cst_12 = arith.constant 0.000000e+00 : f32
    %16 = vector.broadcast %cst_12 : f32 to vector<8x128xf32>
    %17 = arith.cmpf ogt, %15, %16 : vector<8x128xf32>
    %cst_13 = arith.constant 0.00999999977 : f32
    %18 = vector.broadcast %cst_13 : f32 to vector<8x128xf32>
    %19 = arith.mulf %18, %15 : vector<8x128xf32>
    %20 = arith.select %17, %15, %19 : vector<8x128xi1>, vector<8x128xf32>
    %c0_14 = arith.constant 0 : index
    %c0_15 = arith.constant 0 : index
    %21 = vector.load %arg6[%c0_14, %c0_15] : memref<128x128xf32, #tpu.memory_space<vmem>>, vector<128x128xf32>
    %c0_16 = arith.constant 0 : index
    %c0_17 = arith.constant 0 : index
    %22 = vector.load %arg7[%c0_16, %c0_17] : memref<1x128xf32, #tpu.memory_space<vmem>>, vector<1x128xf32>
    %cst_18 = arith.constant dense<0.000000e+00> : vector<8x128xf32>
    %23 = tpu.matmul %20, %21, %cst_18 {dimension_numbers = #tpu.dot_dimension_numbers<[1], [0], [0], [1], [0, 0, 1, 1], [], []>} : vector<8x128xf32>, vector<128x128xf32>, vector<8x128xf32> -> vector<8x128xf32>
    %24 = vector.broadcast %22 : vector<1x128xf32> to vector<8x128xf32>
    %25 = arith.addf %23, %24 : vector<8x128xf32>
    %c0_19 = arith.constant 0 : index
    %c0_20 = arith.constant 0 : index
    %26 = vector.load %arg8[%c0_19, %c0_20] : memref<8x128xf32, #tpu.memory_space<vmem>>, vector<8x128xf32>
    tpu.vector_store %arg8[%c0_19, %c0_20], %25 {strides = array<i32>} : memref<8x128xf32, #tpu.memory_space<vmem>>, vector<8x128xf32>,
    return
  }
  func.func @transform_0(%arg0: i32) -> (i32, i32) {
    %c0_i32 = arith.constant 0 : i32
    %c0_i32_0 = arith.constant 0 : i32
    return %arg0, %c0_i32 : i32, i32
  }
  func.func @transform_1(%arg0: i32) -> (i32, i32) {
    %c0_i32 = arith.constant 0 : i32
    %c0_i32_0 = arith.constant 0 : i32
    %c0_i32_1 = arith.constant 0 : i32
    return %c0_i32, %c0_i32_0 : i32, i32
  }
  func.func @transform_2(%arg0: i32) -> (i32, i32) {
    %c0_i32 = arith.constant 0 : i32
    %c0_i32_0 = arith.constant 0 : i32
    %c0_i32_1 = arith.constant 0 : i32
    return %c0_i32, %c0_i32_0 : i32, i32
  }
  func.func @transform_3(%arg0: i32) -> (i32, i32) {
    %c0_i32 = arith.constant 0 : i32
    %c0_i32_0 = arith.constant 0 : i32
    %c0_i32_1 = arith.constant 0 : i32
    return %c0_i32, %c0_i32_0 : i32, i32
  }
  func.func @transform_4(%arg0: i32) -> (i32, i32) {
    %c0_i32 = arith.constant 0 : i32
    %c0_i32_0 = arith.constant 0 : i32
    %c0_i32_1 = arith.constant 0 : i32
    return %c0_i32, %c0_i32_0 : i32, i32
  }
  func.func @transform_5(%arg0: i32) -> (i32, i32) {
    %c0_i32 = arith.constant 0 : i32
    %c0_i32_0 = arith.constant 0 : i32
    %c0_i32_1 = arith.constant 0 : i32
    return %c0_i32, %c0_i32_0 : i32, i32
  }
  func.func @transform_6(%arg0: i32) -> (i32, i32) {
    %c0_i32 = arith.constant 0 : i32
    %c0_i32_0 = arith.constant 0 : i32
    %c0_i32_1 = arith.constant 0 : i32
    return %c0_i32, %c0_i32_0 : i32, i32
  }
  func.func @transform_7(%arg0: i32) -> (i32, i32) {
    %c0_i32 = arith.constant 0 : i32
    %c0_i32_0 = arith.constant 0 : i32
    return %arg0, %c0_i32 : i32, i32
  }
}

</mosaic_0001>

<llo_original>
// kernel: tpu_custom_call.1
$region0: #{tpu_custom_call.1}
  #allocation0 [shape = 'u32[]', space=smem, size = 0x4, offset = 0x4, fixed_abs, tag = 'smem constant byte address 0x4 - core index']
  #allocation1 [shape = 'u32[144,128]{1,0:T(1,128)}', space=vmem, size = 0x12000, scoped, tag = 'internal scratch']
  %s0 = inlined_call_operand.vmem [shape: f32[8,4], index: 0, kind: input, shape index: {}]
  %s1 = inlined_call_operand.vmem [shape: f32[4,128], index: 1, kind: input, shape index: {}]
  %s2 = inlined_call_operand.vmem [shape: f32[1,128], index: 2, kind: input, shape index: {}]
  %s3 = inlined_call_operand.hbm [shape: f32[128,128], index: 3, kind: input, shape index: {}]
  %s4 = inlined_call_operand.vmem [shape: f32[1,128], index: 4, kind: input, shape index: {}]
  %s5 = inlined_call_operand.hbm [shape: f32[128,128], index: 5, kind: input, shape index: {}]
  %s6 = inlined_call_operand.vmem [shape: f32[1,128], index: 6, kind: input, shape index: {}]
  %s7 = inlined_call_operand.hbm [shape: f32[8,128], index: 7, kind: output, shape index: {}]
  %s8 = sld [smem:[#allocation0]]
  $region46: #{tpu_custom_call.1} parent=0
    _
  %s10 = ssub.s32 1, %s8
  %s11 = scalar_select 0, %s10, %s8
  $region1: #{tpu_custom_call.1} parent=0
    #allocation2 [shape = 'u8[65536]{0}', space=vmem, size = 0x10000, scoped, tag = 'input window, operand 3, single buffered']
    #allocation3 [shape = 's32[1]{0}', space=sflag, size = 0x4, scoped, tag = 'scoped memory for tpu_custom_call.1']
    #allocation4 [shape = 's32[1]{0}', space=sflag, size = 0x4, scoped, tag = 'scoped memory for tpu_custom_call.1']
    #allocation5 [shape = 'u8[65536]{0}', space=vmem, size = 0x10000, scoped, tag = 'input window, operand 5, single buffered']
    #allocation6 [shape = 's32[1]{0}', space=sflag, size = 0x4, scoped, tag = 'scoped memory for tpu_custom_call.1']
    #allocation7 [shape = 'u8[4096]{0}', space=vmem, size = 0x1000, scoped, tag = 'output window, operand 0, single buffered']
    %12 = vsyncpa [#allocation3], 0
    %13 = vsyncpa [#allocation6], 0
    %14 = vsyncpa [#allocation4], 0
    // Predicated region
    $region2: #{tpu_custom_call.1} parent=1 // pred_check
      _
    $region3: #{tpu_custom_call.1} parent=1 // pred_check_branch
      %16 = sbr.rel (0) target = $region5
    $region4: #{tpu_custom_call.1} parent=1 // pred_region
      _
    $region5: #{tpu_custom_call.1} parent=1 // pred_fallthru
      _
    // Predicated region
    $region6: #{tpu_custom_call.1} parent=1 // pred_check
      _
    $region7: #{tpu_custom_call.1} parent=1 // pred_check_branch
      %18 = sbr.rel (0) target = $region9
    $region8: #{tpu_custom_call.1} parent=1 // pred_region
      _
    $region9: #{tpu_custom_call.1} parent=1 // pred_fallthru
      _
    // Predicated region
    $region10: #{tpu_custom_call.1} parent=1 // pred_check
      _
    $region11: #{tpu_custom_call.1} parent=1 // pred_check_branch
      %20 = sbr.rel (0) target = $region13
    $region12: #{tpu_custom_call.1} parent=1 // pred_region
      _
    $region13: #{tpu_custom_call.1} parent=1 // pred_fallthru
      _
    // Predicated region
    $region14: #{tpu_custom_call.1} parent=1 // pred_check
      _
    $region15: #{tpu_custom_call.1} parent=1 // pred_check_branch
      %22 = sbr.rel (0) target = $region17
    $region16: #{tpu_custom_call.1} parent=1 // pred_region
      %s24 = ssub.s32 2048, 2048
      %25 = vsyncadd [#allocation3], %s24
      %s26 = sshll.u32 [#allocation2], 4
      %s27 = int_to_ptr.vmem [resolvable:$true] %s26
      %32 = dma.hbm_to_vmem [thread:$0]  %s3, 2048, %s27, [#allocation3], 128, 128, 8
    $region17: #{tpu_custom_call.1} parent=1 // pred_fallthru
      _
    // Predicated region
    $region18: #{tpu_custom_call.1} parent=1 // pred_check
      _
    $region19: #{tpu_custom_call.1} parent=1 // pred_check_branch
      %34 = sbr.rel (0) target = $region21
    $region20: #{tpu_custom_call.1} parent=1 // pred_region
      _
    $region21: #{tpu_custom_call.1} parent=1 // pred_fallthru
      _
    // Predicated region
    $region22: #{tpu_custom_call.1} parent=1 // pred_check
      _
    $region23: #{tpu_custom_call.1} parent=1 // pred_check_branch
      %36 = sbr.rel (0) target = $region25
    $region24: #{tpu_custom_call.1} parent=1 // pred_region
      %s38 = ssub.s32 2048, 2048
      %39 = vsyncadd [#allocation6], %s38
      %s40 = sshll.u32 [#allocation5], 4
      %s41 = int_to_ptr.vmem [resolvable:$true] %s40
      %46 = dma.hbm_to_vmem [thread:$0]  %s5, 2048, %s41, [#allocation6], 128, 128, 8
    $region25: #{tpu_custom_call.1} parent=1 // pred_fallthru
      _
    // Predicated region
    $region26: #{tpu_custom_call.1} parent=1 // pred_check
      _
    $region27: #{tpu_custom_call.1} parent=1 // pred_check_branch
      %48 = sbr.rel (0) target = $region29
    $region28: #{tpu_custom_call.1} parent=1 // pred_region
      _
    $region29: #{tpu_custom_call.1} parent=1 // pred_fallthru
      _
    // Predicated region
    $region30: #{tpu_custom_call.1} parent=1 // pred_check
      _
    $region31: #{tpu_custom_call.1} parent=1 // pred_check_branch
      %50 = sbr.rel (0) target = $region33
    $region32: #{tpu_custom_call.1} parent=1 // pred_region
      %51 = dma.done [#allocation3], 2048
    $region33: #{tpu_custom_call.1} parent=1 // pred_fallthru
      _
    // Predicated region
    $region34: #{tpu_custom_call.1} parent=1 // pred_check
      _
    $region35: #{tpu_custom_call.1} parent=1 // pred_check_branch
      %53 = sbr.rel (0) target = $region37
    $region36: #{tpu_custom_call.1} parent=1 // pred_region
      %54 = dma.done [#allocation6], 2048
    $region37: #{tpu_custom_call.1} parent=1 // pred_fallthru
      _
    %v55 = vld [vmem:[%s0] sm:$0xff]
    %v56 = vld [vmem:[%s1] sm:$0xf]
    %v57 = vld [vmem:[%s2] sm:$0x1]
    %v59 = vlaneseq
    %v60 = vshrl.u32 %v59, 7
    %v61 = vsub.s32 0, %v60
    %v62 = vrot.slane %v57, %v61
    %vm64 = vcmask 31744
    %v66 = vsel %vm64, %v55, 0
    %vm68 = vcmask 1043456
    %v70 = vsel %vm68, %v56, 0
    %72 = vmatprep.subr.mxu0 0.0
    %73 = vmatpush1.msra.mxu0 0.0
    %74 = vmatprep.subr.mxu0 0.0
    %75 = vmatpush1.msra.mxu0 0.0
    %76 = vmatprep.subr.mxu0 0.0
    %77 = vmatpush1.msra.mxu0 0.0
    %78 = vmatprep.subr.mxu0 0.0
    %79 = vmatpush1.msra.mxu0 0.0
    %80 = vmatprep.subr.mxu0 0.0
    %81 = vmatpush1.msra.mxu0 0.0
    %82 = vmatprep.subr.mxu0 0.0
    %83 = vmatpush1.msra.mxu0 0.0
    %84 = vmatprep.subr.mxu0 0.0
    %85 = vmatpush1.msra.mxu0 0.0
    %86 = vmatprep.subr.mxu0 0.0
    %87 = vmatpush1.msra.mxu0 0.0
    %88 = vmatprep.subr.mxu0 0.0
    %89 = vmatpush1.msra.mxu0 0.0
    %90 = vmatprep.subr.mxu0 0.0
    %91 = vmatpush1.msra.mxu0 0.0
    %92 = vmatprep.subr.mxu0 0.0
    %93 = vmatpush1.msra.mxu0 0.0
    %94 = vmatprep.subr.mxu0 0.0
    %95 = vmatpush1.msra.mxu0 0.0
    %96 = vmatprep.subr.mxu0 0.0
    %97 = vmatpush1.msra.mxu0 0.0
    %98 = vmatprep.subr.mxu0 0.0
    %99 = vmatpush1.msra.mxu0 0.0
    %100 = vmatprep.subr.mxu0 0.0
    %101 = vmatpush1.msra.mxu0 0.0
    %102 = vmatprep.subr.mxu0 0.0
    %103 = vmatpush1.msra.mxu0 %v70
    %104 = vmatprep.subr.mxu0 0.0
    %105 = vmatpush2.msra.mxu0 0.0
    %106 = vmatprep.subr.mxu0 0.0
    %107 = vmatpush2.msra.mxu0 0.0
    %108 = vmatprep.subr.mxu0 0.0
    %109 = vmatpush2.msra.mxu0 0.0
    %110 = vmatprep.subr.mxu0 0.0
    %111 = vmatpush2.msra.mxu0 0.0
    %112 = vmatprep.subr.mxu0 0.0
    %113 = vmatpush2.msra.mxu0 0.0
    %114 = vmatprep.subr.mxu0 0.0
    %115 = vmatpush2.msra.mxu0 0.0
    %116 = vmatprep.subr.mxu0 0.0
    %117 = vmatpush2.msra.mxu0 0.0
    %118 = vmatprep.subr.mxu0 0.0
    %119 = vmatpush2.msra.mxu0 0.0
    %120 = vmatprep.subr.mxu0 0.0
    %121 = vmatpush2.msra.mxu0 0.0
    %122 = vmatprep.subr.mxu0 0.0
    %123 = vmatpush2.msra.mxu0 0.0
    %124 = vmatprep.subr.mxu0 0.0
    %125 = vmatpush2.msra.mxu0 0.0
    %126 = vmatprep.subr.mxu0 0.0
    %127 = vmatpush2.msra.mxu0 0.0
    %128 = vmatprep.subr.mxu0 0.0
    %129 = vmatpush2.msra.mxu0 0.0
    %130 = vmatprep.subr.mxu0 0.0
    %131 = vmatpush2.msra.mxu0 0.0
    %132 = vmatprep.subr.mxu0 0.0
    %133 = vmatpush2.msra.mxu0 0.0
    %134 = vmatprep.subr.mxu0 0.0
    %135 = vmatpush2.msra.mxu0 0.0
    %136 = vmatprep.mubr.f32.mxu0 0.0
    %137 = vmatmul.mubr.f32.gmra.mxu0 %v66
    %v138 = vpop.f32.mrf.mxu0
    %v139 = vadd.f32 %v62, %v138
    %v140 = vpop.f32.mrf.mxu0
    %141 = vdwg.mxu0
    %vm142 = vcmp.gt.f32.partialorder %v139, 0.0
    %v143 = vmul.f32 %v139, 0.01
    %v144 = vsel %vm142, %v139, %v143
    %v145 = vld [vmem:[#allocation2] sm:$0xff]
    %v146 = vld [vmem:[#allocation2 + $0x8] sm:$0xff]
    %v147 = vld [vmem:[#allocation2 + $0x10] sm:$0xff]
    %v148 = vld [vmem:[#allocation2 + $0x18] sm:$0xff]
    %v149 = vld [vmem:[#allocation2 + $0x20] sm:$0xff]
    %v150 = vld [vmem:[#allocation2 + $0x28] sm:$0xff]
    %v151 = vld [vmem:[#allocation2 + $0x30] sm:$0xff]
    %v152 = vld [vmem:[#allocation2 + $0x38] sm:$0xff]
    %v153 = vld [vmem:[#allocation2 + $0x40] sm:$0xff]
    %v154 = vld [vmem:[#allocation2 + $0x48] sm:$0xff]
    %v155 = vld [vmem:[#allocation2 + $0x50] sm:$0xff]
    %v156 = vld [vmem:[#allocation2 + $0x58] sm:$0xff]
    %v157 = vld [vmem:[#allocation2 + $0x60] sm:$0xff]
    %v158 = vld [vmem:[#allocation2 + $0x68] sm:$0xff]
    %v159 = vld [vmem:[#allocation2 + $0x70] sm:$0xff]
    %v160 = vld [vmem:[#allocation2 + $0x78] sm:$0xff]
    %v161 = vld [vmem:[%s4] sm:$0x1]
    %v163 = vlaneseq
    %v164 = vshrl.u32 %v163, 7
    %v165 = vsub.s32 0, %v164
    %v166 = vrot.slane %v161, %v165
    %168 = vmatprep.subr.mxu0 0.0
    %169 = vmatpush1.msra.mxu0 %v160
    %170 = vmatprep.subr.mxu0 0.0
    %171 = vmatpush1.msra.mxu0 %v159
    %172 = vmatprep.subr.mxu0 0.0
    %173 = vmatpush1.msra.mxu0 %v158
    %174 = vmatprep.subr.mxu0 0.0
    %175 = vmatpush1.msra.mxu0 %v157
    %176 = vmatprep.subr.mxu0 0.0
    %177 = vmatpush1.msra.mxu0 %v156
    %178 = vmatprep.subr.mxu0 0.0
    %179 = vmatpush1.msra.mxu0 %v155
    %180 = vmatprep.subr.mxu0 0.0
    %181 = vmatpush1.msra.mxu0 %v154
    %182 = vmatprep.subr.mxu0 0.0
    %183 = vmatpush1.msra.mxu0 %v153
    %184 = vmatprep.subr.mxu0 0.0
    %185 = vmatpush1.msra.mxu0 %v152
    %186 = vmatprep.subr.mxu0 0.0
    %187 = vmatpush1.msra.mxu0 %v151
    %188 = vmatprep.subr.mxu0 0.0
    %189 = vmatpush1.msra.mxu0 %v150
    %190 = vmatprep.subr.mxu0 0.0
    %191 = vmatpush1.msra.mxu0 %v149
    %192 = vmatprep.subr.mxu0 0.0
    %193 = vmatpush1.msra.mxu0 %v148
    %194 = vmatprep.subr.mxu0 0.0
    %195 = vmatpush1.msra.mxu0 %v147
    %196 = vmatprep.subr.mxu0 0.0
    %197 = vmatpush1.msra.mxu0 %v146
    %198 = vmatprep.subr.mxu0 0.0
    %199 = vmatpush1.msra.mxu0 %v145
    %200 = vmatprep.subr.mxu0 0.0
    %201 = vmatpush2.msra.mxu0 0.0
    %202 = vmatprep.subr.mxu0 0.0
    %203 = vmatpush2.msra.mxu0 0.0
    %204 = vmatprep.subr.mxu0 0.0
    %205 = vmatpush2.msra.mxu0 0.0
    %206 = vmatprep.subr.mxu0 0.0
    %207 = vmatpush2.msra.mxu0 0.0
    %208 = vmatprep.subr.mxu0 0.0
    %209 = vmatpush2.msra.mxu0 0.0
    %210 = vmatprep.subr.mxu0 0.0
    %211 = vmatpush2.msra.mxu0 0.0
    %212 = vmatprep.subr.mxu0 0.0
    %213 = vmatpush2.msra.mxu0 0.0
    %214 = vmatprep.subr.mxu0 0.0
    %215 = vmatpush2.msra.mxu0 0.0
    %216 = vmatprep.subr.mxu0 0.0
    %217 = vmatpush2.msra.mxu0 0.0
    %218 = vmatprep.subr.mxu0 0.0
    %219 = vmatpush2.msra.mxu0 0.0
    %220 = vmatprep.subr.mxu0 0.0
    %221 = vmatpush2.msra.mxu0 0.0
    %222 = vmatprep.subr.mxu0 0.0
    %223 = vmatpush2.msra.mxu0 0.0
    %224 = vmatprep.subr.mxu0 0.0
    %225 = vmatpush2.msra.mxu0 0.0
    %226 = vmatprep.subr.mxu0 0.0
    %227 = vmatpush2.msra.mxu0 0.0
    %228 = vmatprep.subr.mxu0 0.0
    %229 = vmatpush2.msra.mxu0 0.0
    %230 = vmatprep.subr.mxu0 0.0
    %231 = vmatpush2.msra.mxu0 0.0
    %232 = vmatprep.mubr.f32.mxu0 0.0
    %233 = vmatmul.mubr.f32.gmra.mxu0 %v144
    %v234 = vpop.f32.mrf.mxu0
    %v235 = vadd.f32 %v166, %v234
    %v236 = vpop.f32.mrf.mxu0
    %237 = vdwg.mxu0
    %vm238 = vcmp.gt.f32.partialorder %v235, 0.0
    %v239 = vmul.f32 %v235, 0.01
    %v240 = vsel %vm238, %v235, %v239
    %v241 = vld [vmem:[#allocation5] sm:$0xff]
    %v242 = vld [vmem:[#allocation5 + $0x8] sm:$0xff]
    %v243 = vld [vmem:[#allocation5 + $0x10] sm:$0xff]
    %v244 = vld [vmem:[#allocation5 + $0x18] sm:$0xff]
    %v245 = vld [vmem:[#allocation5 + $0x20] sm:$0xff]
    %v246 = vld [vmem:[#allocation5 + $0x28] sm:$0xff]
    %v247 = vld [vmem:[#allocation5 + $0x30] sm:$0xff]
    %v248 = vld [vmem:[#allocation5 + $0x38] sm:$0xff]
    %v249 = vld [vmem:[#allocation5 + $0x40] sm:$0xff]
    %v250 = vld [vmem:[#allocation5 + $0x48] sm:$0xff]
    %v251 = vld [vmem:[#allocation5 + $0x50] sm:$0xff]
    %v252 = vld [vmem:[#allocation5 + $0x58] sm:$0xff]
    %v253 = vld [vmem:[#allocation5 + $0x60] sm:$0xff]
    %v254 = vld [vmem:[#allocation5 + $0x68] sm:$0xff]
    %v255 = vld [vmem:[#allocation5 + $0x70] sm:$0xff]
    %v256 = vld [vmem:[#allocation5 + $0x78] sm:$0xff]
    %v257 = vld [vmem:[%s6] sm:$0x1]
    %v259 = vlaneseq
    %v260 = vshrl.u32 %v259, 7
    %v261 = vsub.s32 0, %v260
    %v262 = vrot.slane %v257, %v261
    %264 = vmatprep.subr.mxu0 0.0
    %265 = vmatpush1.msra.mxu0 %v256
    %266 = vmatprep.subr.mxu0 0.0
    %267 = vmatpush1.msra.mxu0 %v255
    %268 = vmatprep.subr.mxu0 0.0
    %269 = vmatpush1.msra.mxu0 %v254
    %270 = vmatprep.subr.mxu0 0.0
    %271 = vmatpush1.msra.mxu0 %v253
    %272 = vmatprep.subr.mxu0 0.0
    %273 = vmatpush1.msra.mxu0 %v252
    %274 = vmatprep.subr.mxu0 0.0
    %275 = vmatpush1.msra.mxu0 %v251
    %276 = vmatprep.subr.mxu0 0.0
    %277 = vmatpush1.msra.mxu0 %v250
    %278 = vmatprep.subr.mxu0 0.0
    %279 = vmatpush1.msra.mxu0 %v249
    %280 = vmatprep.subr.mxu0 0.0
    %281 = vmatpush1.msra.mxu0 %v248
    %282 = vmatprep.subr.mxu0 0.0
    %283 = vmatpush1.msra.mxu0 %v247
    %284 = vmatprep.subr.mxu0 0.0
    %285 = vmatpush1.msra.mxu0 %v246
    %286 = vmatprep.subr.mxu0 0.0
    %287 = vmatpush1.msra.mxu0 %v245
    %288 = vmatprep.subr.mxu0 0.0
    %289 = vmatpush1.msra.mxu0 %v244
    %290 = vmatprep.subr.mxu0 0.0
    %291 = vmatpush1.msra.mxu0 %v243
    %292 = vmatprep.subr.mxu0 0.0
    %293 = vmatpush1.msra.mxu0 %v242
    %294 = vmatprep.subr.mxu0 0.0
    %295 = vmatpush1.msra.mxu0 %v241
    %296 = vmatprep.subr.mxu0 0.0
    %297 = vmatpush2.msra.mxu0 0.0
    %298 = vmatprep.subr.mxu0 0.0
    %299 = vmatpush2.msra.mxu0 0.0
    %300 = vmatprep.subr.mxu0 0.0
    %301 = vmatpush2.msra.mxu0 0.0
    %302 = vmatprep.subr.mxu0 0.0
    %303 = vmatpush2.msra.mxu0 0.0
    %304 = vmatprep.subr.mxu0 0.0
    %305 = vmatpush2.msra.mxu0 0.0
    %306 = vmatprep.subr.mxu0 0.0
    %307 = vmatpush2.msra.mxu0 0.0
    %308 = vmatprep.subr.mxu0 0.0
    %309 = vmatpush2.msra.mxu0 0.0
    %310 = vmatprep.subr.mxu0 0.0
    %311 = vmatpush2.msra.mxu0 0.0
    %312 = vmatprep.subr.mxu0 0.0
    %313 = vmatpush2.msra.mxu0 0.0
    %314 = vmatprep.subr.mxu0 0.0
    %315 = vmatpush2.msra.mxu0 0.0
    %316 = vmatprep.subr.mxu0 0.0
    %317 = vmatpush2.msra.mxu0 0.0
    %318 = vmatprep.subr.mxu0 0.0
    %319 = vmatpush2.msra.mxu0 0.0
    %320 = vmatprep.subr.mxu0 0.0
    %321 = vmatpush2.msra.mxu0 0.0
    %322 = vmatprep.subr.mxu0 0.0
    %323 = vmatpush2.msra.mxu0 0.0
    %324 = vmatprep.subr.mxu0 0.0
    %325 = vmatpush2.msra.mxu0 0.0
    %326 = vmatprep.subr.mxu0 0.0
    %327 = vmatpush2.msra.mxu0 0.0
    %328 = vmatprep.mubr.f32.mxu0 0.0
    %329 = vmatmul.mubr.f32.gmra.mxu0 %v240
    %v330 = vpop.f32.mrf.mxu0
    %v331 = vadd.f32 %v262, %v330
    %v332 = vpop.f32.mrf.mxu0
    %333 = vdwg.mxu0
    %334 = vst [vmem:[#allocation7] sm:$0xff] %v331
    // Predicated region
    $region38: #{tpu_custom_call.1} parent=1 // pred_check
      _
    $region39: #{tpu_custom_call.1} parent=1 // pred_check_branch
      %336 = sbr.rel (0) target = $region41
    $region40: #{tpu_custom_call.1} parent=1 // pred_region
      %s338 = ssub.s32 128, 128
      %339 = vsyncadd [#allocation4], %s338
      %s341 = sshll.u32 [#allocation7], 4
      %s342 = int_to_ptr.vmem [resolvable:$true] %s341
      %344 = dma.vmem_to_hbm [thread:$0]  %s342, 128, %s7, [#allocation4]
    $region41: #{tpu_custom_call.1} parent=1 // pred_fallthru
      _
    // Predicated region
    $region42: #{tpu_custom_call.1} parent=1 // pred_check
      _
    $region43: #{tpu_custom_call.1} parent=1 // pred_check_branch
      %346 = sbr.rel (0) target = $region45
    $region44: #{tpu_custom_call.1} parent=1 // pred_region
      %347 = dma.done [#allocation4], 128
    $region45: #{tpu_custom_call.1} parent=1 // pred_fallthru
      _
    %348 = vsyncpa [#allocation3], 1
    %349 = vsyncpa [#allocation6], 1
    %350 = vsyncpa [#allocation4], 1

</llo_original>
